<compile_context>
chip_gen: v5e
topology: v5e:2x2
jax: 0.10.0
libtpu: 0.0.40
codegen_flags: <defaults>
</compile_context>

<pallas_src>
import functools
import math

import jax
import jax.numpy as jnp
from jax.experimental import pallas as pl
from jax.experimental.pallas import tpu as pltpu


def _round_up(x: int, m: int) -> int:
    return ((x + m - 1) // m) * m


def _vmem_capacity_bytes() -> int:
    """Physical VMEM per TensorCore; conservative 64 MiB fallback (v7x)."""
    try:
        return int(pltpu.get_tpu_info().vmem_capacity_bytes)
    except Exception:
        return 64 << 20


# ---------------------------------------------------------------------------
# Kernel bodies: one (row-tile i, d_ff-tile k) grid step.
# ---------------------------------------------------------------------------
def _partial_out(x_ref, w13_ref, w2t_ref, tf):
    """[ SiLU(x @ W1^T_k) * (x @ W3^T_k) ] @ W2^T_k for d_ff tile k, in f32."""
    x = x_ref[...]
    # Single fused MXU matmul producing [h1 | h2] for this d_ff tile.
    h = jnp.dot(x, w13_ref[...], preferred_element_type=jnp.float32)
    h1 = h[:, :tf]
    h2 = h[:, tf:]
    gated = (h1 * jax.nn.sigmoid(h1)) * h2            # SiLU gate in f32 (VPU/EUP)
    return jnp.dot(gated.astype(w2t_ref.dtype), w2t_ref[...],
                   preferred_element_type=jnp.float32)


def swiglu_kernel_f32_out(x_ref, w13_ref, w2t_ref, o_ref, *, tf):
    """f32 output: accumulate straight into the resident output block
    (no scratch, no zero-init pass, no final copy)."""
    k = pl.program_id(1)
    p = _partial_out(x_ref, w13_ref, w2t_ref, tf)

    @pl.when(k == 0)
    def _store():
        o_ref[...] = p

    @pl.when(k > 0)
    def _accum():
        o_ref[...] += p


def swiglu_kernel_acc(x_ref, w13_ref, w2t_ref, o_ref, acc_ref, *, tf):
    """Narrow output dtype (bf16/fp8): accumulate in an f32 VMEM scratch."""
    k = pl.program_id(1)
    p = _partial_out(x_ref, w13_ref, w2t_ref, tf)

    @pl.when(k == 0)
    def _store():
        acc_ref[...] = p

    @pl.when(k > 0)
    def _accum():
        acc_ref[...] += p

    @pl.when(k == pl.num_programs(1) - 1)
    def _finalize():
        o_ref[...] = acc_ref[...].astype(o_ref.dtype)


# ---------------------------------------------------------------------------
# Init-time weight packing (hoisted out of the per-call hot path).
# ---------------------------------------------------------------------------
def pack_swiglu_weights(w1, w2, w3, *, tf, dtype=None):
    """Transpose, zero-pad d_ff to a multiple of tf, and interleave W1^T/W3^T
    per d_ff tile so each kernel step does one (d_model, 2*tf) matmul.

    `dtype` (e.g. jnp.bfloat16) downcasts the packed weights once, at init
    time, so production calls run native-MXU bf16 matmuls and stream half the
    weight bytes.  Padding is exact: padded W1^T columns give h1 == 0,
    SiLU(0) == 0, so padded d_ff slots contribute nothing.
    Returns (w13, w2t): w13 (d_model, 2*d_ff_pad), w2t (d_ff_pad, d_model).
    """
    d_ff, d_model = w1.shape
    if dtype is not None:
        w1, w2, w3 = (w.astype(dtype) for w in (w1, w2, w3))
    d_ff_pad = _round_up(d_ff, tf)
    pad = d_ff_pad - d_ff
    w1t = jnp.pad(w1, ((0, pad), (0, 0))).T          # (d_model, d_ff_pad)
    w3t = jnp.pad(w3, ((0, pad), (0, 0))).T          # (d_model, d_ff_pad)
    w2t = jnp.pad(w2, ((0, 0), (0, pad))).T          # (d_ff_pad, d_model)
    nkt = d_ff_pad // tf
    w13 = jnp.concatenate(
        [w1t.reshape(d_model, nkt, tf), w3t.reshape(d_model, nkt, tf)],
        axis=-1,
    ).reshape(d_model, nkt * 2 * tf)
    return w13, w2t


# ---------------------------------------------------------------------------
# VMEM-budget-aware tile selection.
# ---------------------------------------------------------------------------
_TM_CANDIDATES = (512, 256, 128, 64, 32, 16, 8)
_TF_CANDIDATES = (1024, 512, 256, 128)


def _tile_footprint_bytes(tm, tf, d_model, x_itemsize, w_itemsize, out_is_f32):
    """Estimated VMEM footprint of one grid step (double-buffered blocks)."""
    acc = 0 if out_is_f32 else tm * d_model * 4
    return (2 * tm * d_model * x_itemsize            # x tile
            + 2 * d_model * (2 * tf) * w_itemsize    # [W1^T | W3^T] tile
            + 2 * tf * d_model * w_itemsize          # W2^T tile
            + 2 * tm * d_model * x_itemsize          # output tile
            + acc                                    # f32 accumulator scratch
            + tm * 3 * tf * 4)                       # f32 intermediates (h, gated)


def pick_tiles(M, d_model, d_ff, x_dtype, w_dtype, *,
               vmem_budget_bytes=None, min_row_tiles=2):
    """Pick the largest (tm, tf) whose per-step footprint fits ~75% of the
    chip's physical VMEM.  tm is aligned to the sublane packing of the
    activation dtype (8 f32 / 16 bf16 / 32 int8-fp8), tf to the 128-lane
    width, and tf is kept >= 256 unless VMEM forces it lower.  When M allows,
    the row tile is shrunk so there are >= `min_row_tiles` row tiles on the
    "parallel" axis (keeps both v7x TensorCores busy for small-M shapes)."""
    xi = jnp.dtype(x_dtype).itemsize
    wi = jnp.dtype(w_dtype).itemsize
    out_is_f32 = jnp.dtype(x_dtype) == jnp.dtype(jnp.float32)
    sub = {4: 8, 2: 16, 1: 32}[xi]
    m_pad = _round_up(max(int(M), 1), sub)
    f_pad = _round_up(int(d_ff), 128)

    if vmem_budget_bytes is None:
        vmem_budget_bytes = int(0.75 * _vmem_capacity_bytes())

    tm_cands = sorted({min(_round_up(t, sub), m_pad) for t in _TM_CANDIDATES},
                      reverse=True)
    tf_cands = sorted({min(t, f_pad) for t in _TF_CANDIDATES}, reverse=True)

    def fits(a, b):
        return _tile_footprint_bytes(a, b, d_model, xi, wi,
                                     out_is_f32) <= vmem_budget_bytes

    tm, tf = tm_cands[-1], tf_cands[-1]          # smallest legal fallback
    found = False
    for min_tf in (256, 0):                      # pass 1: keep tf >= 256
        cands_f = [t for t in tf_cands if t >= min_tf]
        if not cands_f:
            continue
        for tm_c in tm_cands:
            for tf_c in cands_f:
                if fits(tm_c, tf_c):
                    tm, tf, found = tm_c, tf_c, True
                    break
            if found:
                break
        if found:
            break

    # Megacore: guarantee >= min_row_tiles row tiles when M allows it.
    if min_row_tiles > 1 and -(-int(M) // tm) < min_row_tiles and m_pad > sub:
        tm = max(sub, _round_up(-(-int(M) // min_row_tiles), sub))
    return tm, tf


def _vmem_limit_bytes(tm, tf, d_model, x_dtype, w_dtype):
    cap = _vmem_capacity_bytes()
    xi = jnp.dtype(x_dtype).itemsize
    wi = jnp.dtype(w_dtype).itemsize
    out_is_f32 = jnp.dtype(x_dtype) == jnp.dtype(jnp.float32)
    est = _tile_footprint_bytes(tm, tf, d_model, xi, wi, out_is_f32)
    est = int(est * 1.3) + (4 << 20)
    hard_cap = int(0.9 * cap)                    # never exceed physical VMEM
    return max(min(est, hard_cap), min(32 << 20, hard_cap))


# ---------------------------------------------------------------------------
# Per-call entry point (weights already packed).
# ---------------------------------------------------------------------------
@functools.partial(jax.jit, static_argnames=("tm", "tf"))
def swiglu_pallas(x, w13, w2t, *, tm, tf):
    """x: (..., d_model); w13: (d_model, 2*d_ff_pad); w2t: (d_ff_pad, d_model)."""
    d_model = x.shape[-1]
    d_ff_pad = w2t.shape[0]
    assert w13.shape == (d_model, 2 * d_ff_pad) and d_ff_pad % tf == 0
    nkt = d_ff_pad // tf

    lead = x.shape[:-1]
    x2d = x.reshape(-1, d_model)
    M = x2d.shape[0]
    gm = pl.cdiv(M, tm)
    M_pad = gm * tm
    if M_pad != M:
        x2d = jnp.pad(x2d, ((0, M_pad - M), (0, 0)))

    out_is_f32 = jnp.dtype(x.dtype) == jnp.dtype(jnp.float32)
    if out_is_f32:
        kernel = functools.partial(swiglu_kernel_f32_out, tf=tf)
        scratch_shapes = []
    else:
        kernel = functools.partial(swiglu_kernel_acc, tf=tf)
        scratch_shapes = [pltpu.VMEM((tm, d_model), jnp.float32)]

    xi = jnp.dtype(x.dtype).itemsize
    wi = jnp.dtype(w13.dtype).itemsize
    cost = pl.CostEstimate(
        flops=int(6 * M_pad * d_model * d_ff_pad),
        transcendentals=int(M_pad * d_ff_pad),
        bytes_accessed=int(2 * M_pad * d_model * xi
                           + 3 * d_ff_pad * d_model * wi),
    )

    out2d = pl.pallas_call(
        kernel,
        out_shape=jax.ShapeDtypeStruct((M_pad, d_model), x.dtype),
        grid_spec=pltpu.PrefetchScalarGridSpec(
            num_scalar_prefetch=0,
            grid=(gm, nkt),                                        # reduction last
            in_specs=[
                pl.BlockSpec((tm, d_model), lambda i, k: (i, 0)),        # x rows
                pl.BlockSpec((d_model, 2 * tf), lambda i, k: (0, k)),    # [W1^T|W3^T]
                pl.BlockSpec((tf, d_model), lambda i, k: (k, 0)),        # W2^T tile
            ],
            out_specs=pl.BlockSpec((tm, d_model), lambda i, k: (i, 0)),
            scratch_shapes=scratch_shapes,
        ),
        compiler_params=pltpu.CompilerParams(
            dimension_semantics=("parallel", "arbitrary"),
            vmem_limit_bytes=_vmem_limit_bytes(tm, tf, d_model, x.dtype,
                                               w13.dtype),
        ),
        cost_estimate=cost,
    )(x2d, w13, w2t)

    if M_pad != M:
        out2d = out2d[:M]
    return out2d.reshape(*lead, d_model)


# ---------------------------------------------------------------------------
# Reference + test
# ---------------------------------------------------------------------------
def trunc_normal(key, shape, std, dtype=jnp.float32):
    return std * jax.random.truncated_normal(key, -3.0, 3.0, shape, dtype)


def swiglu_ref(x, w1, w2, w3):
    h1 = jnp.einsum("...d,fd->...f", x, w1)
    h2 = jnp.einsum("...d,fd->...f", x, w3)
    g = h1 * jax.nn.sigmoid(h1) * h2
    return jnp.einsum("...f,df->...d", g, w2)


if __name__ == "__main__":
    d_model = 64
    d_ff = math.ceil(d_model * 8 / 3 / 64) * 64  # 192 (module default)
    batch, seq = 2, 8

    key = jax.random.PRNGKey(0)
    kx, k1, k2, k3 = jax.random.split(key, 4)
    std = math.sqrt(2.0 / (d_model + d_ff))

    x = jax.random.normal(kx, (batch, seq, d_model), dtype=jnp.float32)
    w1 = trunc_normal(k1, (d_ff, d_model), std)   # (d_ff, d_model)
    w2 = trunc_normal(k2, (d_model, d_ff), std)   # (d_model, d_ff)
    w3 = trunc_normal(k3, (d_ff, d_model), std)   # (d_ff, d_model)

    # ---- float32 path (tight tolerance; accumulates directly into output) ----
    tm, tf = pick_tiles(M=batch * seq, d_model=d_model, d_ff=d_ff,
                        x_dtype=x.dtype, w_dtype=jnp.float32)
    w13, w2t = pack_swiglu_weights(w1, w2, w3, tf=tf)
    out = swiglu_pallas(x, w13, w2t, tm=tm, tf=tf)
    jax.block_until_ready(out)
    ref = swiglu_ref(x, w1, w2, w3)
    assert out.shape == (batch, seq, d_model)
    assert jnp.allclose(out, ref, atol=1e-5, rtol=1e-5)

    # ---- ragged row count (M = 15) exercises cdiv + padding + 2-row-tile split
    x2 = jax.random.normal(k1, (3, 5, d_model), dtype=jnp.float32)
    tm2, _ = pick_tiles(M=3 * 5, d_model=d_model, d_ff=d_ff,
                        x_dtype=x2.dtype, w_dtype=jnp.float32)
    out2 = swiglu_pallas(x2, w13, w2t, tm=tm2, tf=tf)
    jax.block_until_ready(out2)
    ref2 = swiglu_ref(x2, w1, w2, w3)
    assert jnp.allclose(out2, ref2, atol=1e-5, rtol=1e-5)

    # ---- bf16 production path (weights downcast once at pack time) ----
    xb = x.astype(jnp.bfloat16)
    tm_b, tf_b = pick_tiles(M=batch * seq, d_model=d_model, d_ff=d_ff,
                            x_dtype=jnp.bfloat16, w_dtype=jnp.bfloat16)
    w13_b, w2t_b = pack_swiglu_weights(w1, w2, w3, tf=tf_b, dtype=jnp.bfloat16)
    out_b = swiglu_pallas(xb, w13_b, w2t_b, tm=tm_b, tf=tf_b)
    jax.block_until_ready(out_b)
    ref_b = swiglu_ref(xb.astype(jnp.float32),
                       w1.astype(jnp.bfloat16).astype(jnp.float32),
                       w2.astype(jnp.bfloat16).astype(jnp.float32),
                       w3.astype(jnp.bfloat16).astype(jnp.float32))
    assert out_b.shape == (batch, seq, d_model)
    assert jnp.allclose(out_b.astype(jnp.float32), ref_b, atol=2e-2, rtol=2e-2)

    print("KERNEL_OK")
</pallas_src>

<mosaic_0001>
module attributes {stable_mosaic.version = 11 : i64} {
  func.func @swiglu_kernel_f32_out(%arg0: i32, %arg1: i32, %arg2: memref<8x64xf32, #tpu.memory_space<vmem>>, %arg3: memref<64x512xf32, #tpu.memory_space<vmem>>, %arg4: memref<256x64xf32, #tpu.memory_space<vmem>>, %arg5: memref<8x64xf32, #tpu.memory_space<vmem>>) attributes {dimension_semantics = [#tpu.dimension_semantics<parallel>, #tpu.dimension_semantics<arbitrary>], iteration_bounds = array<i64: 2, 1>, scalar_prefetch = 0 : i64, scratch_operands = 0 : i64, tpu.core_type = #tpu.core_type<tc>, window_params = [{transform_indices = @transform_0, window_bounds = array<i64: 8, 64>}, {transform_indices = @transform_1, window_bounds = array<i64: 64, 512>}, {transform_indices = @transform_2, window_bounds = array<i64: 256, 64>}, {transform_indices = @transform_3, window_bounds = array<i64: 8, 64>}]} {
    %c0 = arith.constant 0 : index
    %c0_0 = arith.constant 0 : index
    %0 = vector.load %arg2[%c0, %c0_0] : memref<8x64xf32, #tpu.memory_space<vmem>>, vector<8x64xf32>
    %c0_1 = arith.constant 0 : index
    %c0_2 = arith.constant 0 : index
    %1 = vector.load %arg3[%c0_1, %c0_2] : memref<64x512xf32, #tpu.memory_space<vmem>>, vector<64x512xf32>
    %cst = arith.constant dense<0.000000e+00> : vector<8x512xf32>
    %2 = tpu.matmul %0, %1, %cst {dimension_numbers = #tpu.dot_dimension_numbers<[1], [0], [0], [1], [0, 0, 1, 1], [], []>} : vector<8x64xf32>, vector<64x512xf32>, vector<8x512xf32> -> vector<8x512xf32>
    %3 = vector.extract_strided_slice %2 {offsets = [0, 0], sizes = [8, 256], strides = [1, 1]} : vector<8x512xf32> to vector<8x256xf32>
    %4 = vector.extract_strided_slice %2 {offsets = [0, 256], sizes = [8, 256], strides = [1, 1]} : vector<8x512xf32> to vector<8x256xf32>
    %5 = arith.negf %3 : vector<8x256xf32>
    %6 = math.exp %5 : vector<8x256xf32>
    %cst_3 = arith.constant 1.000000e+00 : f32
    %7 = vector.broadcast %cst_3 : f32 to vector<8x256xf32>
    %8 = arith.addf %7, %6 : vector<8x256xf32>
    %9 = arith.divf %7, %8 : vector<8x256xf32>
    %10 = arith.mulf %3, %9 : vector<8x256xf32>
    %11 = arith.mulf %10, %4 : vector<8x256xf32>
    %c0_4 = arith.constant 0 : index
    %c0_5 = arith.constant 0 : index
    %12 = vector.load %arg4[%c0_4, %c0_5] : memref<256x64xf32, #tpu.memory_space<vmem>>, vector<256x64xf32>
    %cst_6 = arith.constant dense<0.000000e+00> : vector<8x64xf32>
    %13 = tpu.matmul %11, %12, %cst_6 {dimension_numbers = #tpu.dot_dimension_numbers<[1], [0], [0], [1], [0, 0, 1, 1], [], []>} : vector<8x256xf32>, vector<256x64xf32>, vector<8x64xf32> -> vector<8x64xf32>
    %c0_i32 = arith.constant 0 : i32
    %14 = arith.cmpi eq, %arg1, %c0_i32 : i32
    %15 = arith.extui %14 : i1 to i32
    %c0_i32_7 = arith.constant 0 : i32
    %16 = arith.cmpi ne, %15, %c0_i32_7 : i32
    scf.if %16 {
      %c0_10 = arith.constant 0 : index
      %c0_11 = arith.constant 0 : index
      %20 = vector.load %arg5[%c0_10, %c0_11] : memref<8x64xf32, #tpu.memory_space<vmem>>, vector<8x64xf32>
      tpu.vector_store %arg5[%c0_10, %c0_11], %13 {strides = array<i32>} : memref<8x64xf32, #tpu.memory_space<vmem>>, vector<8x64xf32>,
    } else {
    }
    %c0_i32_8 = arith.constant 0 : i32
    %17 = arith.cmpi sgt, %arg1, %c0_i32_8 : i32
    %18 = arith.extui %17 : i1 to i32
    %c0_i32_9 = arith.constant 0 : i32
    %19 = arith.cmpi ne, %18, %c0_i32_9 : i32
    scf.if %19 {
      %c0_10 = arith.constant 0 : index
      %c0_11 = arith.constant 0 : index
      %20 = vector.load %arg5[%c0_10, %c0_11] : memref<8x64xf32, #tpu.memory_space<vmem>>, vector<8x64xf32>
      %21 = arith.addf %20, %13 : vector<8x64xf32>
      %c0_12 = arith.constant 0 : index
      %c0_13 = arith.constant 0 : index
      %22 = vector.load %arg5[%c0_12, %c0_13] : memref<8x64xf32, #tpu.memory_space<vmem>>, vector<8x64xf32>
      tpu.vector_store %arg5[%c0_12, %c0_13], %21 {strides = array<i32>} : memref<8x64xf32, #tpu.memory_space<vmem>>, vector<8x64xf32>,
    } else {
    }
    return
  }
  func.func @transform_0(%arg0: i32, %arg1: i32) -> (i32, i32) {
    %c0_i32 = arith.constant 0 : i32
    %c0_i32_0 = arith.constant 0 : i32
    return %arg0, %c0_i32 : i32, i32
  }
  func.func @transform_1(%arg0: i32, %arg1: i32) -> (i32, i32) {
    %c0_i32 = arith.constant 0 : i32
    %c0_i32_0 = arith.constant 0 : i32
    return %c0_i32, %arg1 : i32, i32
  }
  func.func @transform_2(%arg0: i32, %arg1: i32) -> (i32, i32) {
    %c0_i32 = arith.constant 0 : i32
    %c0_i32_0 = arith.constant 0 : i32
    return %arg1, %c0_i32 : i32, i32
  }
  func.func @transform_3(%arg0: i32, %arg1: i32) -> (i32, i32) {
    %c0_i32 = arith.constant 0 : i32
    %c0_i32_0 = arith.constant 0 : i32
    return %arg0, %c0_i32 : i32, i32
  }
}

</mosaic_0001>

<llo_original>
// kernel: swiglu_pallas.1
$region0: #{swiglu_pallas.1}
  #allocation0 [shape = 'u32[]', space=smem, size = 0x4, offset = 0x4, fixed_abs, tag = 'smem constant byte address 0x4 - core index']
  #allocation1 [shape = 'u32[72,128]{1,0:T(1,128)}', space=vmem, size = 0x9000, scoped, tag = 'internal scratch']
  %s0 = inlined_call_operand.vmem [shape: f32[16,64], index: 0, kind: input, shape index: {}]
  %s1 = inlined_call_operand.vmem [shape: f32[64,512], index: 1, kind: input, shape index: {}]
  %s2 = inlined_call_operand.vmem [shape: f32[256,64], index: 2, kind: input, shape index: {}]
  %s3 = inlined_call_operand.hbm [shape: f32[16,64], index: 3, kind: output, shape index: {}]
  %s4 = sld [smem:[#allocation0]]
  $region53: #{swiglu_pallas.1} parent=0
    _
  %s6 = ssub.s32 1, %s4
  %s7 = scalar_select 0, %s6, %s4
  $region1: #{swiglu_pallas.1} parent=0
    #allocation2 [shape = 'u8[8192]{0}', space=vmem, size = 0x2000, scoped, tag = 'output window, operand 0']
    #allocation3 [shape = 's32[2]{0}', space=sflag, size = 0x8, scoped, tag = 'scoped memory for swiglu_pallas.1']
    %8 = vsyncpa [#allocation3], 0
    %s9 = scalar_lea.sflag [#allocation3], 1
    %10 = vsyncpa %s9, 0
    loop: start=0, step=1, limit=4
    $region2: #{swiglu_pallas.1} parent=1 // loop_pre_header
      _
    $region3: #{swiglu_pallas.1} parent=1 // loop_header
      %s12 = sphi 0, %s16
      %p13 = scmp.ge.s32.totalorder %s12, 4
      %s19 = sphi 0, %s31
      %s20 = sphi 0, %s27
      %s21 = sphi 0, %s19
      %s22 = sphi 0, %s20
      %s23 = sphi 0, %s21
      %s24 = sphi 0, %s22
      %s34 = sphi 0, %s36
      %s37 = sphi 0, %s34
      %s38 = sphi 0, %s37
      %s54 = sphi 0, %s38
      %s60 = sphi 0, %s62
      %s63 = sphi 0, %s60
      %s64 = sphi 0, %s63
      %s80 = sphi 0, %s64
      %s86 = sphi 0, %s88
      %s89 = sphi 0, %s86
      %s90 = sphi 0, %s89
      %s106 = sphi 0, %s90
      %s112 = sphi 0, %s114
      %s115 = sphi 0, %s112
      %s116 = sphi 0, %s115
      %s132 = sphi 0, %s116
    $region4: #{swiglu_pallas.1} parent=1 // loop_header_branch
      %15 = sbr.rel (%p13) target = $region8
    $region5: #{swiglu_pallas.1} parent=1 // loop_body
      %s17 = ssub.s32 %s12, 1
      %s18 = ssub.s32 %s12, 2
      %s25 = sadd.s32 1, %s20
      %p26 = scmp.ge.s32.totalorder %s25, 1
      %s27 = scalar_select %p26, 0, %s25
      %s28 = sadd.s32 1, %s19
      %s29 = scalar_select %p26, %s28, %s19
      %p30 = scmp.ge.s32.totalorder %s29, 2
      %s31 = scalar_select %p30, 0, %s29
      %s32 = ssub.s32 %s19, %s31
      %p33 = scmp.eq.s32.totalorder %s32, 0
      %s35 = sadd.s32 %s34, 1
      %s36 = scalar_select %p33, %s34, %s35
      %p39 = pneg %p33
      %p40 = scmp.eq.s32.totalorder %s12, 1
      %p41 = por %p39, %p40
      %p42 = scmp.ne.s32.totalorder %s34, %s37
      %p43 = scmp.eq.s32.totalorder %s12, 0
      %p44 = por %p42, %p43
      %p45 = scmp.ne.s32.totalorder %s34, %s37
      %p46 = scmp.eq.s32.totalorder %s17, 1
      %p47 = por %p45, %p46
      %p48 = scmp.ne.s32.totalorder %s37, %s38
      %p49 = scmp.eq.s32.totalorder %s17, 0
      %p50 = por %p48, %p49
      %p51 = scmp.ne.s32.totalorder %s37, %s38
      %p52 = scmp.eq.s32.totalorder %s18, 1
      %p53 = por %p51, %p52
      %p55 = scmp.ne.s32.totalorder %s38, %s54
      %p56 = scmp.eq.s32.totalorder %s18, 0
      %p57 = por %p55, %p56
      %s58 = ssub.s32 %s20, %s27
      %p59 = scmp.eq.s32.totalorder %s58, 0
      %s61 = sadd.s32 %s60, 1
      %s62 = scalar_select %p59, %s60, %s61
      %p65 = pneg %p59
      %p66 = scmp.eq.s32.totalorder %s12, 1
      %p67 = por %p65, %p66
      %p68 = scmp.ne.s32.totalorder %s60, %s63
      %p69 = scmp.eq.s32.totalorder %s12, 0
      %p70 = por %p68, %p69
      %p71 = scmp.ne.s32.totalorder %s60, %s63
      %p72 = scmp.eq.s32.totalorder %s17, 1
      %p73 = por %p71, %p72
      %p74 = scmp.ne.s32.totalorder %s63, %s64
      %p75 = scmp.eq.s32.totalorder %s17, 0
      %p76 = por %p74, %p75
      %p77 = scmp.ne.s32.totalorder %s63, %s64
      %p78 = scmp.eq.s32.totalorder %s18, 1
      %p79 = por %p77, %p78
      %p81 = scmp.ne.s32.totalorder %s64, %s80
      %p82 = scmp.eq.s32.totalorder %s18, 0
      %p83 = por %p81, %p82
      %s84 = ssub.s32 %s20, %s27
      %p85 = scmp.eq.s32.totalorder %s84, 0
      %s87 = sadd.s32 %s86, 1
      %s88 = scalar_select %p85, %s86, %s87
      %p91 = pneg %p85
      %p92 = scmp.eq.s32.totalorder %s12, 1
      %p93 = por %p91, %p92
      %p94 = scmp.ne.s32.totalorder %s86, %s89
      %p95 = scmp.eq.s32.totalorder %s12, 0
      %p96 = por %p94, %p95
      %p97 = scmp.ne.s32.totalorder %s86, %s89
      %p98 = scmp.eq.s32.totalorder %s17, 1
      %p99 = por %p97, %p98
      %p100 = scmp.ne.s32.totalorder %s89, %s90
      %p101 = scmp.eq.s32.totalorder %s17, 0
      %p102 = por %p100, %p101
      %p103 = scmp.ne.s32.totalorder %s89, %s90
      %p104 = scmp.eq.s32.totalorder %s18, 1
      %p105 = por %p103, %p104
      %p107 = scmp.ne.s32.totalorder %s90, %s106
      %p108 = scmp.eq.s32.totalorder %s18, 0
      %p109 = por %p107, %p108
      %s110 = ssub.s32 %s19, %s31
      %p111 = scmp.eq.s32.totalorder %s110, 0
      %s113 = sadd.s32 %s112, 1
      %s114 = scalar_select %p111, %s112, %s113
      %p117 = pneg %p111
      %p118 = scmp.eq.s32.totalorder %s12, 1
      %p119 = por %p117, %p118
      %p120 = scmp.ne.s32.totalorder %s112, %s115
      %p121 = scmp.eq.s32.totalorder %s12, 0
      %p122 = por %p120, %p121
      %p123 = scmp.ne.s32.totalorder %s112, %s115
      %p124 = scmp.eq.s32.totalorder %s17, 1
      %p125 = por %p123, %p124
      %p126 = scmp.ne.s32.totalorder %s115, %s116
      %p127 = scmp.eq.s32.totalorder %s17, 0
      %p128 = por %p126, %p127
      %p129 = scmp.ne.s32.totalorder %s115, %s116
      %p130 = scmp.eq.s32.totalorder %s18, 1
      %p131 = por %p129, %p130
      %p133 = scmp.ne.s32.totalorder %s116, %s132
      %p134 = scmp.eq.s32.totalorder %s18, 0
      %p135 = por %p133, %p134
      %p136 = scmp.le.s32.totalorder 1, %s12
      %p137 = scmp.lt.s32.totalorder %s12, 3
      %p138 = pnand %p136, %p137
      %p139 = pneg %p138
      // Predicated region
      $region9: #{swiglu_pallas.1} parent=5 // pred_check
        _
      $region10: #{swiglu_pallas.1} parent=5 // pred_check_branch
        %141 = sbr.rel (%p138) target = $region12
      $region11: #{swiglu_pallas.1} parent=5 // pred_region
        %s142 = ssub.s32 %s12, 1
        // Predicated region
        $region13: #{swiglu_pallas.1} parent=11 // pred_check
          %p143 = pneg %p76
        $region14: #{swiglu_pallas.1} parent=11 // pred_check_branch
          %145 = sbr.rel (%p143) target = $region16
        $region15: #{swiglu_pallas.1} parent=11 // pred_region
          %s146 = smul.u32 4, %s22
          %p147 = scmp.lt.s32.totalorder %s146, 3
          %s148 = scalar_select %p147, %s146, 3
          %s149 = smul.addr %s148, 8
          %s150 = scalar_lea.vmem %s1, %s149
          %s151 = smul.u32 4, %s22
        $region16: #{swiglu_pallas.1} parent=11 // pred_fallthru
          _
        // Predicated region
        $region17: #{swiglu_pallas.1} parent=11 // pred_check
          %p152 = pneg %p102
        $region18: #{swiglu_pallas.1} parent=11 // pred_check_branch
          %154 = sbr.rel (%p152) target = $region20
        $region19: #{swiglu_pallas.1} parent=11 // pred_region
          %s155 = smul.u32 32, %s22
          %p156 = scmp.lt.s32.totalorder %s155, 31
          %s157 = scalar_select %p156, %s155, 31
          %s158 = smul.addr %s157, 8
          %s159 = scalar_lea.vmem %s2, %s158
          %s160 = smul.u32 32, %s22
        $region20: #{swiglu_pallas.1} parent=11 // pred_fallthru
          _
      $region12: #{swiglu_pallas.1} parent=5 // pred_fallthru
        _
      %p161 = scmp.lt.s32.totalorder %s12, 2
      // Predicated region
      $region21: #{swiglu_pallas.1} parent=5 // pred_check
        %p162 = pneg %p161
      $region22: #{swiglu_pallas.1} parent=5 // pred_check_branch
        %164 = sbr.rel (%p162) target = $region24
      $region23: #{swiglu_pallas.1} parent=5 // pred_region
        // Predicated region
        $region25: #{swiglu_pallas.1} parent=23 // pred_check
          %p165 = pneg %p44
        $region26: #{swiglu_pallas.1} parent=23 // pred_check_branch
          %167 = sbr.rel (%p165) target = $region28
        $region27: #{swiglu_pallas.1} parent=23 // pred_region
          %p168 = scmp.lt.s32.totalorder %s19, 1
          %s169 = scalar_select %p168, %s19, 1
          %s170 = smul.addr %s169, 8
          %s171 = scalar_lea.vmem %s0, %s170
        $region28: #{swiglu_pallas.1} parent=23 // pred_fallthru
          _
      $region24: #{swiglu_pallas.1} parent=5 // pred_fallthru
        _
      %p172 = scmp.le.s32.totalorder 1, %s12
      %p173 = scmp.lt.s32.totalorder %s12, 3
      %p174 = pnand %p172, %p173
      %p175 = pneg %p174
      // Predicated region
      $region29: #{swiglu_pallas.1} parent=5 // pred_check
        _
      $region30: #{swiglu_pallas.1} parent=5 // pred_check_branch
        %177 = sbr.rel (%p174) target = $region32
      $region31: #{swiglu_pallas.1} parent=5 // pred_region
        %s178 = ssub.s32 %s12, 1
        %p179 = scmp.lt.s32.totalorder %s21, 1
        %s180 = scalar_select %p179, %s21, 1
        %s181 = smul.addr %s180, 8
        %s182 = scalar_lea.vmem %s0, %s181
        %p183 = pneg %p50
        %p184 = pneg %p47
        %s185 = smul.u32 4, %s22
        %p186 = scmp.lt.s32.totalorder %s185, 3
        %s187 = scalar_select %p186, %s185, 3
        %s188 = smul.addr %s187, 8
        %s189 = scalar_lea.vmem %s1, %s188
        %p190 = pneg %p76
        %p191 = pneg %p73
        %s192 = smul.u32 32, %s22
        %p193 = scmp.lt.s32.totalorder %s192, 31
        %s194 = scalar_select %p193, %s192, 31
        %s195 = smul.addr %s194, 8
        %s196 = scalar_lea.vmem %s2, %s195
        %p197 = pneg %p102
        %p198 = pneg %p99
        %p199 = pneg %p128
        %p200 = pneg %p125
        %s201 = sand.u32 %s115, 1
        %s202 = scalar_lea.sflag [#allocation3], %s201
        %s203 = sand.u32 %s115, 1
        %s204 = smul.addr %s203, 8
        %s205 = scalar_lea.vmem [#allocation2], %s204
        %p206 = scmp.lt.s32.totalorder %s21, 1
        %s207 = scalar_select %p206, %s21, 1
        %s208 = smul.addr %s207, 8
        %s209 = scalar_lea.vmem %s0, %s208
        %s210 = smul.u32 4, %s22
        %p211 = scmp.lt.s32.totalorder %s210, 3
        %s212 = scalar_select %p211, %s210, 3
        %s213 = smul.addr %s212, 8
        %s214 = scalar_lea.vmem %s1, %s213
        %s215 = smul.u32 4, %s22
        %s216 = smul.u32 32, %s22
        %p217 = scmp.lt.s32.totalorder %s216, 31
        %s218 = scalar_select %p217, %s216, 31
        %s219 = smul.addr %s218, 8
        %s220 = scalar_lea.vmem %s2, %s219
        %s221 = smul.u32 32, %s22
        %v222 = vld [vmem:[%s209] sm:$0xff]
        %v223 = vld [vmem:[%s214] sm:$0xff]
        %v224 = vld [vmem:[%s214 + $0x8] sm:$0xff]
        %v225 = vld [vmem:[%s214 + $0x10] sm:$0xff]
        %v226 = vld [vmem:[%s214 + $0x18] sm:$0xff]
        %v227 = vld [vmem:[%s214 + $0x20] sm:$0xff]
        %v228 = vld [vmem:[%s214 + $0x28] sm:$0xff]
        %v229 = vld [vmem:[%s214 + $0x30] sm:$0xff]
        %v230 = vld [vmem:[%s214 + $0x38] sm:$0xff]
        %v231 = vld [vmem:[%s214 + $0x40] sm:$0xff]
        %v232 = vld [vmem:[%s214 + $0x48] sm:$0xff]
        %v233 = vld [vmem:[%s214 + $0x50] sm:$0xff]
        %v234 = vld [vmem:[%s214 + $0x58] sm:$0xff]
        %v235 = vld [vmem:[%s214 + $0x60] sm:$0xff]
        %v236 = vld [vmem:[%s214 + $0x68] sm:$0xff]
        %v237 = vld [vmem:[%s214 + $0x70] sm:$0xff]
        %v238 = vld [vmem:[%s214 + $0x78] sm:$0xff]
        %v239 = vld [vmem:[%s214 + $0x80] sm:$0xff]
        %v240 = vld [vmem:[%s214 + $0x88] sm:$0xff]
        %v241 = vld [vmem:[%s214 + $0x90] sm:$0xff]
        %v242 = vld [vmem:[%s214 + $0x98] sm:$0xff]
        %v243 = vld [vmem:[%s214 + $0xa0] sm:$0xff]
        %v244 = vld [vmem:[%s214 + $0xa8] sm:$0xff]
        %v245 = vld [vmem:[%s214 + $0xb0] sm:$0xff]
        %v246 = vld [vmem:[%s214 + $0xb8] sm:$0xff]
        %v247 = vld [vmem:[%s214 + $0xc0] sm:$0xff]
        %v248 = vld [vmem:[%s214 + $0xc8] sm:$0xff]
        %v249 = vld [vmem:[%s214 + $0xd0] sm:$0xff]
        %v250 = vld [vmem:[%s214 + $0xd8] sm:$0xff]
        %v251 = vld [vmem:[%s214 + $0xe0] sm:$0xff]
        %v252 = vld [vmem:[%s214 + $0xe8] sm:$0xff]
        %v253 = vld [vmem:[%s214 + $0xf0] sm:$0xff]
        %v254 = vld [vmem:[%s214 + $0xf8] sm:$0xff]
        %vm255 = vcmask 523264
        %v257 = vsel %vm255, %v222, 0
        %259 = vmatpush.msra.mxu0 0.0
        %260 = vmatpush.msra.mxu0 0.0
        %261 = vmatpush.msra.mxu0 0.0
        %262 = vmatpush.msra.mxu0 0.0
        %263 = vmatpush.msra.mxu0 0.0
        %264 = vmatpush.msra.mxu0 0.0
        %265 = vmatpush.msra.mxu0 0.0
        %266 = vmatpush.msra.mxu0 0.0
        %267 = vmatpush.msra.mxu0 %v251
        %268 = vmatpush.msra.mxu0 %v247
        %269 = vmatpush.msra.mxu0 %v243
        %270 = vmatpush.msra.mxu0 %v239
        %271 = vmatpush.msra.mxu0 %v235
        %272 = vmatpush.msra.mxu0 %v231
        %273 = vmatpush.msra.mxu0 %v227
        %274 = vmatpush.msra.mxu0 %v223
        %275 = vmatmul.f32.gmra.mxu0 %v257
        %v276 = vpop.f32.mrf.mxu0
        %v277 = vadd.f32 0.0, %v276
        %278 = vdwg.mxu0
        %279 = vmatpush.msra.mxu0 0.0
        %280 = vmatpush.msra.mxu0 0.0
        %281 = vmatpush.msra.mxu0 0.0
        %282 = vmatpush.msra.mxu0 0.0
        %283 = vmatpush.msra.mxu0 0.0
        %284 = vmatpush.msra.mxu0 0.0
        %285 = vmatpush.msra.mxu0 0.0
        %286 = vmatpush.msra.mxu0 0.0
        %287 = vmatpush.msra.mxu0 %v252
        %288 = vmatpush.msra.mxu0 %v248
        %289 = vmatpush.msra.mxu0 %v244
        %290 = vmatpush.msra.mxu0 %v240
        %291 = vmatpush.msra.mxu0 %v236
        %292 = vmatpush.msra.mxu0 %v232
        %293 = vmatpush.msra.mxu0 %v228
        %294 = vmatpush.msra.mxu0 %v224
        %295 = vmatmul.f32.gmra.mxu0 %v257
        %v296 = vpop.f32.mrf.mxu0
        %v297 = vadd.f32 0.0, %v296
        %298 = vdwg.mxu0
        %299 = vmatpush.msra.mxu0 0.0
        %300 = vmatpush.msra.mxu0 0.0
        %301 = vmatpush.msra.mxu0 0.0
        %302 = vmatpush.msra.mxu0 0.0
        %303 = vmatpush.msra.mxu0 0.0
        %304 = vmatpush.msra.mxu0 0.0
        %305 = vmatpush.msra.mxu0 0.0
        %306 = vmatpush.msra.mxu0 0.0
        %307 = vmatpush.msra.mxu0 %v253
        %308 = vmatpush.msra.mxu0 %v249
        %309 = vmatpush.msra.mxu0 %v245
        %310 = vmatpush.msra.mxu0 %v241
        %311 = vmatpush.msra.mxu0 %v237
        %312 = vmatpush.msra.mxu0 %v233
        %313 = vmatpush.msra.mxu0 %v229
        %314 = vmatpush.msra.mxu0 %v225
        %315 = vmatmul.f32.gmra.mxu0 %v257
        %v316 = vpop.f32.mrf.mxu0
        %v317 = vadd.f32 0.0, %v316
        %318 = vdwg.mxu0
        %319 = vmatpush.msra.mxu0 0.0
        %320 = vmatpush.msra.mxu0 0.0
        %321 = vmatpush.msra.mxu0 0.0
        %322 = vmatpush.msra.mxu0 0.0
        %323 = vmatpush.msra.mxu0 0.0
        %324 = vmatpush.msra.mxu0 0.0
        %325 = vmatpush.msra.mxu0 0.0
        %326 = vmatpush.msra.mxu0 0.0
        %327 = vmatpush.msra.mxu0 %v254
        %328 = vmatpush.msra.mxu0 %v250
        %329 = vmatpush.msra.mxu0 %v246
        %330 = vmatpush.msra.mxu0 %v242
        %331 = vmatpush.msra.mxu0 %v238
        %332 = vmatpush.msra.mxu0 %v234
        %333 = vmatpush.msra.mxu0 %v230
        %334 = vmatpush.msra.mxu0 %v226
        %335 = vmatmul.f32.gmra.mxu0 %v257
        %v336 = vpop.f32.mrf.mxu0
        %v337 = vadd.f32 0.0, %v336
        %338 = vdwg.mxu0
        %v339 = vxor.u32 %v277, 2147483648
        %v340 = vxor.u32 %v297, 2147483648
        %v341 = vmul.f32 %v339, 1.442695
        %v342 = vpow.pop %v341
        %v343 = vmul.f32 %v340, 1.442695
        %v344 = vpow.pop %v343
        %v345 = vadd.f32 %v342, 1.0
        %v346 = vadd.f32 %v344, 1.0
        %v347 = vrcp.pop %v345
        %v348 = vmul.f32 %v345, %v347
        %v349 = vsub.f32 1.0, %v348
        %v350 = vmul.f32 %v347, %v349
        %v351 = vadd.f32 %v347, %v350
        %vm352 = vweird.f32 %v345
        %vm353 = vweird.f32 %v347
        %vm354 = vmor %vm352, %vm353
        %v355 = vsel %vm354, %v347, %v351
        %v356 = vand.u32 2147483647, %v345
        %vm357 = vcmp.eq.f32.partialorder %v356, 8.507059e+37
        %v358 = vand.u32 %v345, 2147483648
        %v359 = vor.u32 1.1754944e-38, %v358
        %v360 = vsel %vm357, %v359, %v355
        %v361 = vmul.f32 1.0, %v360
        %v362 = vrcp.pop %v346
        %v363 = vmul.f32 %v346, %v362
        %v364 = vsub.f32 1.0, %v363
        %v365 = vmul.f32 %v362, %v364
        %v366 = vadd.f32 %v362, %v365
        %vm367 = vweird.f32 %v346
        %vm368 = vweird.f32 %v362
        %vm369 = vmor %vm367, %vm368
        %v370 = vsel %vm369, %v362, %v366
        %v371 = vand.u32 2147483647, %v346
        %vm372 = vcmp.eq.f32.partialorder %v371, 8.507059e+37
        %v373 = vand.u32 %v346, 2147483648
        %v374 = vor.u32 1.1754944e-38, %v373
        %v375 = vsel %vm372, %v374, %v370
        %v376 = vmul.f32 1.0, %v375
        %v377 = vmul.f32 %v277, %v361
        %v378 = vmul.f32 %v297, %v376
        %v379 = vmul.f32 %v377, %v317
        %v380 = vmul.f32 %v378, %v337
        %v381 = vld [vmem:[%s220] sm:$0xff]
        %v382 = vld [vmem:[%s220 + $0x8] sm:$0xff]
        %v383 = vld [vmem:[%s220 + $0x10] sm:$0xff]
        %v384 = vld [vmem:[%s220 + $0x18] sm:$0xff]
        %v385 = vld [vmem:[%s220 + $0x20] sm:$0xff]
        %v386 = vld [vmem:[%s220 + $0x28] sm:$0xff]
        %v387 = vld [vmem:[%s220 + $0x30] sm:$0xff]
        %v388 = vld [vmem:[%s220 + $0x38] sm:$0xff]
        %v389 = vld [vmem:[%s220 + $0x40] sm:$0xff]
        %v390 = vld [vmem:[%s220 + $0x48] sm:$0xff]
        %v391 = vld [vmem:[%s220 + $0x50] sm:$0xff]
        %v392 = vld [vmem:[%s220 + $0x58] sm:$0xff]
        %v393 = vld [vmem:[%s220 + $0x60] sm:$0xff]
        %v394 = vld [vmem:[%s220 + $0x68] sm:$0xff]
        %v395 = vld [vmem:[%s220 + $0x70] sm:$0xff]
        %v396 = vld [vmem:[%s220 + $0x78] sm:$0xff]
        %v397 = vld [vmem:[%s220 + $0x80] sm:$0xff]
        %v398 = vld [vmem:[%s220 + $0x88] sm:$0xff]
        %v399 = vld [vmem:[%s220 + $0x90] sm:$0xff]
        %v400 = vld [vmem:[%s220 + $0x98] sm:$0xff]
        %v401 = vld [vmem:[%s220 + $0xa0] sm:$0xff]
        %v402 = vld [vmem:[%s220 + $0xa8] sm:$0xff]
        %v403 = vld [vmem:[%s220 + $0xb0] sm:$0xff]
        %v404 = vld [vmem:[%s220 + $0xb8] sm:$0xff]
        %v405 = vld [vmem:[%s220 + $0xc0] sm:$0xff]
        %v406 = vld [vmem:[%s220 + $0xc8] sm:$0xff]
        %v407 = vld [vmem:[%s220 + $0xd0] sm:$0xff]
        %v408 = vld [vmem:[%s220 + $0xd8] sm:$0xff]
        %v409 = vld [vmem:[%s220 + $0xe0] sm:$0xff]
        %v410 = vld [vmem:[%s220 + $0xe8] sm:$0xff]
        %v411 = vld [vmem:[%s220 + $0xf0] sm:$0xff]
        %v412 = vld [vmem:[%s220 + $0xf8] sm:$0xff]
        %413 = vmatpush.msra.mxu0 %v396
        %414 = vmatpush.msra.mxu0 %v395
        %415 = vmatpush.msra.mxu0 %v394
        %416 = vmatpush.msra.mxu0 %v393
        %417 = vmatpush.msra.mxu0 %v392
        %418 = vmatpush.msra.mxu0 %v391
        %419 = vmatpush.msra.mxu0 %v390
        %420 = vmatpush.msra.mxu0 %v389
        %421 = vmatpush.msra.mxu0 %v388
        %422 = vmatpush.msra.mxu0 %v387
        %423 = vmatpush.msra.mxu0 %v386
        %424 = vmatpush.msra.mxu0 %v385
        %425 = vmatpush.msra.mxu0 %v384
        %426 = vmatpush.msra.mxu0 %v383
        %427 = vmatpush.msra.mxu0 %v382
        %428 = vmatpush.msra.mxu0 %v381
        %429 = vmatmul.f32.gmra.mxu0 %v379
        %v430 = vpop.f32.mrf.mxu0
        %v431 = vadd.f32 0.0, %v430
        %432 = vdwg.mxu0
        %433 = vmatpush.msra.mxu0 %v412
        %434 = vmatpush.msra.mxu0 %v411
        %435 = vmatpush.msra.mxu0 %v410
        %436 = vmatpush.msra.mxu0 %v409
        %437 = vmatpush.msra.mxu0 %v408
        %438 = vmatpush.msra.mxu0 %v407
        %439 = vmatpush.msra.mxu0 %v406
        %440 = vmatpush.msra.mxu0 %v405
        %441 = vmatpush.msra.mxu0 %v404
        %442 = vmatpush.msra.mxu0 %v403
        %443 = vmatpush.msra.mxu0 %v402
        %444 = vmatpush.msra.mxu0 %v401
        %445 = vmatpush.msra.mxu0 %v400
        %446 = vmatpush.msra.mxu0 %v399
        %447 = vmatpush.msra.mxu0 %v398
        %448 = vmatpush.msra.mxu0 %v397
        %449 = vmatmul.f32.gmra.mxu0 %v380
        %v450 = vpop.f32.mrf.mxu0
        %v451 = vadd.f32 %v431, %v450
        %452 = vdwg.mxu0
        %p453 = scmp.eq.s32.totalorder %s22, 0
        // Predicated region
        $region33: #{swiglu_pallas.1} parent=31 // pred_check
          %p454 = pneg %p453
        $region34: #{swiglu_pallas.1} parent=31 // pred_check_branch
          %456 = sbr.rel (%p454) target = $region36
        $region35: #{swiglu_pallas.1} parent=31 // pred_region
          %457 = vst.msk [vmem:[%s205] sm:$0xff] %vm255, %v451
        $region36: #{swiglu_pallas.1} parent=31 // pred_fallthru
          _
        %p458 = scmp.gt.s32.totalorder %s22, 0
        // Predicated region
        $region37: #{swiglu_pallas.1} parent=31 // pred_check
          %p459 = pneg %p458
        $region38: #{swiglu_pallas.1} parent=31 // pred_check_branch
          %461 = sbr.rel (%p459) target = $region40
        $region39: #{swiglu_pallas.1} parent=31 // pred_region
          %v462 = vld [vmem:[%s205] sm:$0xff]
          %v463 = vadd.f32 %v462, %v451
          %464 = vst.msk [vmem:[%s205] sm:$0xff] %vm255, %v463
        $region40: #{swiglu_pallas.1} parent=31 // pred_fallthru
          _
        %s465 = sand.u32 %s115, 1
        %s466 = scalar_lea.sflag [#allocation3], %s465
        %s467 = sand.u32 %s115, 1
        %s468 = smul.addr %s467, 8
        %s469 = scalar_lea.vmem [#allocation2], %s468
        // Predicated region
        $region41: #{swiglu_pallas.1} parent=31 // pred_check
          %p470 = pneg %p125
        $region42: #{swiglu_pallas.1} parent=31 // pred_check_branch
          %472 = sbr.rel (%p470) target = $region44
        $region43: #{swiglu_pallas.1} parent=31 // pred_region
          %474 = vsyncadd %s466, 0
          %s475 = smul.addr %s21, 8
          %s476 = scalar_lea.hbm %s3, %s475
          %s478 = sshll.u32 %s469, 4
          %s479 = int_to_ptr.vmem [resolvable:$true] %s478
          %s480 = sshll.u32 %s476, 4
          %s481 = int_to_ptr.hbm [resolvable:$true] %s480
          %483 = dma.vmem_to_hbm [thread:$0]  %s479, 128, %s481, %s466
        $region44: #{swiglu_pallas.1} parent=31 // pred_fallthru
          _
      $region32: #{swiglu_pallas.1} parent=5 // pred_fallthru
        _
      %p484 = scmp.le.s32.totalorder 2, %s12
      // Predicated region
      $region45: #{swiglu_pallas.1} parent=5 // pred_check
        %p485 = pneg %p484
      $region46: #{swiglu_pallas.1} parent=5 // pred_check_branch
        %487 = sbr.rel (%p485) target = $region48
      $region47: #{swiglu_pallas.1} parent=5 // pred_region
        %s488 = ssub.s32 %s12, 2
        // Predicated region
        $region49: #{swiglu_pallas.1} parent=47 // pred_check
          %p489 = pneg %p131
        $region50: #{swiglu_pallas.1} parent=47 // pred_check_branch
          %491 = sbr.rel (%p489) target = $region52
        $region51: #{swiglu_pallas.1} parent=47 // pred_region
          %s492 = sand.u32 %s116, 1
          %s493 = scalar_lea.sflag [#allocation3], %s492
          %s494 = sand.u32 %s116, 1
          %s495 = smul.addr %s494, 8
          %s496 = scalar_lea.vmem [#allocation2], %s495
          %498 = dma.done %s493, 128
        $region52: #{swiglu_pallas.1} parent=47 // pred_fallthru
          _
      $region48: #{swiglu_pallas.1} parent=5 // pred_fallthru
        _
    $region6: #{swiglu_pallas.1} parent=1 // loop_footer
      %s16 = sadd.s32 1, %s12
    $region7: #{swiglu_pallas.1} parent=1 // loop_footer_branch
      %11 = sbr.rel target = $region3
    $region8: #{swiglu_pallas.1} parent=1 // loop_exit
      _
    %499 = vsyncpa [#allocation3], 1
    %s500 = scalar_lea.sflag [#allocation3], 1
    %501 = vsyncpa %s500, 1

</llo_original>
